<compile_context>
chip_gen: v7x
topology: tpu7x:2x2x1
jax: 0.10.0
libtpu: 0.0.40
codegen_flags: <defaults>
</compile_context>

<pallas_src>
import math
from functools import partial

import jax
import jax.numpy as jnp
import numpy as np
from jax.experimental import pallas as pl
from jax.experimental.pallas import tpu as pltpu


# ----------------------------------------------------------------------------
# Hardware-aware helpers
# ----------------------------------------------------------------------------

_FALLBACK_VMEM = 64 * 1024 * 1024  # conservative: v7x per-TensorCore VMEM


def _vmem_capacity_bytes() -> int:
    try:
        return int(pltpu.get_tpu_info().vmem_capacity_bytes)
    except Exception:
        return _FALLBACK_VMEM


def _vmem_limit_bytes() -> int:
    # ~65% of this generation's VMEM: leaves headroom for Mosaic internal
    # scratch and the double-buffered activation tiles.
    return int(0.65 * _vmem_capacity_bytes())


def _tile_cap() -> int:
    # Larger tiles amortize the ~0.35us per-grid-step overhead; 64-MiB parts
    # (v7x) get a smaller cap so weights + tiles + f32 scratch still fit.
    return 512 if _vmem_capacity_bytes() > 96 * 1024 * 1024 else 256


def _pick_tile(dim: int, cap: int) -> int:
    t = min(dim, cap)
    while dim % t != 0:
        t //= 2
    return max(t, 1)


def _const_block_spec(shape, index_map):
    """BlockSpec for blocks whose index never changes: single-buffer them."""
    kwargs = {}
    if hasattr(pl, "Buffered"):
        kwargs["pipeline_mode"] = pl.Buffered(1)
    return pl.BlockSpec(shape, index_map, **kwargs)


# ----------------------------------------------------------------------------
# Pass 1: fused Q/K/V projection (computed once; scale folded into Q)
# ----------------------------------------------------------------------------

def _qkv_proj_kernel(xq_ref, xk_ref, xv_ref,
                     wq_ref, wk_ref, wv_ref,
                     bq_ref, bk_ref, bv_ref,
                     q_ref, k_ref, v_ref, *, scale):
    xq = xq_ref[0]                                                # (TS, Din)
    xk = xk_ref[0]
    xv = xv_ref[0]
    q = jnp.dot(xq, wq_ref[...], preferred_element_type=jnp.float32) + bq_ref[...]
    k = jnp.dot(xk, wk_ref[...], preferred_element_type=jnp.float32) + bk_ref[...]
    v = jnp.dot(xv, wv_ref[...], preferred_element_type=jnp.float32) + bv_ref[...]
    q_ref[0] = (q * scale).astype(q_ref.dtype)                    # fold 1/sqrt(hd)
    k_ref[0] = k.astype(k_ref.dtype)
    v_ref[0] = v.astype(v_ref.dtype)


def _qkv_projection(xq, xk, xv, wq, wk, wv, bq, bk, bv,
                    scale, compute_dtype, ts):
    B, S, Din = xq.shape
    E = wq.shape[1]
    grid = (B, S // ts)

    x_spec = pl.BlockSpec((1, ts, Din), lambda b, si: (b, si, 0))
    w_spec = _const_block_spec((Din, E), lambda b, si: (0, 0))
    b_spec = _const_block_spec((1, E), lambda b, si: (0, 0))
    out_spec = pl.BlockSpec((1, ts, E), lambda b, si: (b, si, 0))
    out_sds = jax.ShapeDtypeStruct((B, S, E), compute_dtype)

    return pl.pallas_call(
        partial(_qkv_proj_kernel, scale=scale),
        out_shape=(out_sds, out_sds, out_sds),
        grid=grid,
        in_specs=[x_spec, x_spec, x_spec,
                  w_spec, w_spec, w_spec,
                  b_spec, b_spec, b_spec],
        out_specs=(out_spec, out_spec, out_spec),
        compiler_params=pltpu.CompilerParams(
            dimension_semantics=("parallel", "parallel"),
            vmem_limit_bytes=_vmem_limit_bytes()),
    )(xq, xk, xv, wq, wk, wv, bq, bk, bv)


# ----------------------------------------------------------------------------
# Pass 2: flash attention (heads batched) + fused output projection
# ----------------------------------------------------------------------------

def _flash_attn_kernel(q_ref, k_ref, v_ref, wo_ref, bo_ref, o_ref,
                       m_scratch, l_scratch, acc_scratch, *, approx_recip):
    ki = pl.program_id(2)
    nk = pl.num_programs(2)

    @pl.when(ki == 0)
    def _init():
        m_scratch[...] = jnp.full(m_scratch.shape, -jnp.inf, m_scratch.dtype)
        l_scratch[...] = jnp.zeros(l_scratch.shape, l_scratch.dtype)
        acc_scratch[...] = jnp.zeros(acc_scratch.shape, acc_scratch.dtype)

    q = q_ref[0]   # (H, TQ, hd)  compute dtype, scale pre-folded
    k = k_ref[0]   # (H, TK, hd)
    v = v_ref[0]   # (H, TK, hd)

    # All heads batched on the leading axis: no per-head lane slicing, no
    # Python per-head unroll (bounded live set, batched MXU passes).
    s = jnp.einsum("hqd,hkd->hqk", q, k,
                   preferred_element_type=jnp.float32)            # (H, TQ, TK)

    m_prev = m_scratch[...]                                       # (H, TQ, 1)
    l_prev = l_scratch[...]
    m_new = jnp.maximum(m_prev, jnp.max(s, axis=-1, keepdims=True))
    alpha = jnp.exp(m_prev - m_new)
    p = jnp.exp(s - m_new)
    l_scratch[...] = alpha * l_prev + jnp.sum(p, axis=-1, keepdims=True)
    pv = jnp.einsum("hqk,hkd->hqd", p.astype(v.dtype), v,
                    preferred_element_type=jnp.float32)           # (H, TQ, hd)
    acc_scratch[...] = alpha * acc_scratch[...] + pv
    m_scratch[...] = m_new

    @pl.when(ki == nk - 1)
    def _finalize():
        H, TQ, hd = acc_scratch.shape
        if approx_recip:
            inv_l = pl.reciprocal(l_scratch[...], approx=True)    # EUP slot (bf16 path)
        else:
            inv_l = 1.0 / l_scratch[...]                          # exact (f32 path)
        heads = acc_scratch[...] * inv_l                          # (H, TQ, hd) f32
        # One amortized relayout per q-tile to concatenate heads, then a single
        # deep-K (TQ,E) @ (E,E) output projection with a lane-dense store.
        vals = jnp.transpose(heads, (1, 0, 2)).reshape(TQ, H * hd)
        vals = vals.astype(wo_ref.dtype)
        out = jnp.dot(vals, wo_ref[...], preferred_element_type=jnp.float32)
        out = out + bo_ref[...]
        o_ref[0] = out.astype(o_ref.dtype)


def _flash_attention(q_h, k_h, v_h, wo, bo, out_dtype, tq, tk, approx_recip):
    B, H, S, hd = q_h.shape
    E = H * hd
    grid = (B, S // tq, S // tk)

    q_spec = pl.BlockSpec((1, H, tq, hd), lambda b, qi, ki: (b, 0, qi, 0))
    kv_spec = pl.BlockSpec((1, H, tk, hd), lambda b, qi, ki: (b, 0, ki, 0))
    wo_spec = _const_block_spec((E, E), lambda b, qi, ki: (0, 0))
    bo_spec = _const_block_spec((1, E), lambda b, qi, ki: (0, 0))
    out_spec = pl.BlockSpec((1, tq, E), lambda b, qi, ki: (b, qi, 0))

    return pl.pallas_call(
        partial(_flash_attn_kernel, approx_recip=approx_recip),
        out_shape=jax.ShapeDtypeStruct((B, S, E), out_dtype),
        grid=grid,
        in_specs=[q_spec, kv_spec, kv_spec, wo_spec, bo_spec],
        out_specs=out_spec,
        scratch_shapes=[
            pltpu.VMEM((H, tq, 1), jnp.float32),    # running max
            pltpu.VMEM((H, tq, 1), jnp.float32),    # running denominator
            pltpu.VMEM((H, tq, hd), jnp.float32),   # per-head output accumulator
        ],
        compiler_params=pltpu.CompilerParams(
            # v7x note: B * (S // tq) should stay >= 2 so both TensorCores work.
            dimension_semantics=("parallel", "parallel", "arbitrary"),
            vmem_limit_bytes=_vmem_limit_bytes()),
    )(q_h, k_h, v_h, wo, bo)


# ----------------------------------------------------------------------------
# Public wrapper
# ----------------------------------------------------------------------------

def multihead_attention(xq, xk, xv, params, num_heads, *,
                        compute_dtype=jnp.bfloat16, tq=None, tk=None, ts=None):
    """Equivalent of MultiheadAttention.forward with mask=None.

    xq/xk/xv: (B, S, input_dim).  Returns (B, S, embed_dim) in xq.dtype.
    """
    B, S, Din = xq.shape
    E = params["wq"].shape[1]
    assert E % num_heads == 0
    hd = E // num_heads
    scale = 1.0 / math.sqrt(hd)
    out_dtype = xq.dtype

    cap = _tile_cap()
    TS = ts if ts is not None else _pick_tile(S, cap)
    TQ = tq if tq is not None else _pick_tile(S, cap)
    TK = tk if tk is not None else _pick_tile(S, cap)
    assert S % TS == 0 and S % TQ == 0 and S % TK == 0

    cast = lambda a: a.astype(compute_dtype)
    f32 = lambda a: a.astype(jnp.float32)

    # Pass 1: Q/K/V projections computed exactly once (Pallas).
    q_p, k_p, v_p = _qkv_projection(
        cast(xq), cast(xk), cast(xv),
        cast(params["wq"]), cast(params["wk"]), cast(params["wv"]),
        f32(params["bq"]), f32(params["bk"]), f32(params["bv"]),
        scale, compute_dtype, TS)

    # Layout plumbing only (XLA): packed (B,S,E) -> head-major (B,H,S,hd).
    def to_heads(x):
        return x.reshape(B, S, num_heads, hd).transpose(0, 2, 1, 3)

    q_h, k_h, v_h = to_heads(q_p), to_heads(k_p), to_heads(v_p)

    # Pass 2: flash attention + fused output projection (Pallas).
    approx_recip = jnp.dtype(compute_dtype) == jnp.dtype(jnp.bfloat16)
    return _flash_attention(q_h, k_h, v_h, cast(params["wo"]),
                            f32(params["bo"]), out_dtype, TQ, TK, approx_recip)


# ----------------------------------------------------------------------------
# Parameters + pure-JAX reference (mirrors the PyTorch module, mask=None)
# ----------------------------------------------------------------------------

def xavier_uniform(key, fan_in, fan_out, dtype=jnp.float32):
    bound = math.sqrt(6.0 / (fan_in + fan_out))
    # Stored as (in, out) so kernels compute x @ W (== PyTorch x @ W.T).
    return jax.random.uniform(key, (fan_in, fan_out), dtype,
                              minval=-bound, maxval=bound)


def init_params(key, input_dim, embed_dim):
    ks = jax.random.split(key, 4)
    return {
        "wq": xavier_uniform(ks[0], input_dim, embed_dim),
        "wk": xavier_uniform(ks[1], input_dim, embed_dim),
        "wv": xavier_uniform(ks[2], input_dim, embed_dim),
        "wo": xavier_uniform(ks[3], embed_dim, embed_dim),
        "bq": jnp.zeros((1, embed_dim), jnp.float32),
        "bk": jnp.zeros((1, embed_dim), jnp.float32),
        "bv": jnp.zeros((1, embed_dim), jnp.float32),
        "bo": jnp.zeros((1, embed_dim), jnp.float32),
    }


def reference_mha(xq, xk, xv, params, num_heads):
    B, S, _ = xq.shape
    E = params["wq"].shape[1]
    hd = E // num_heads

    def proj(x, w, b):
        return x @ w + b

    q = proj(xq, params["wq"], params["bq"]).reshape(B, S, num_heads, hd).transpose(0, 2, 1, 3)
    k = proj(xk, params["wk"], params["bk"]).reshape(B, S, num_heads, hd).transpose(0, 2, 1, 3)
    v = proj(xv, params["wv"], params["bv"]).reshape(B, S, num_heads, hd).transpose(0, 2, 1, 3)

    logits = jnp.einsum("bhqd,bhkd->bhqk", q, k) / math.sqrt(hd)
    attn = jax.nn.softmax(logits, axis=-1)
    vals = jnp.einsum("bhqk,bhkd->bhqd", attn, v)
    vals = vals.transpose(0, 2, 1, 3).reshape(B, S, E)
    return vals @ params["wo"] + params["bo"]


if __name__ == "__main__":
    B, S, input_dim, embed_dim, num_heads = 2, 8, 32, 32, 4

    key = jax.random.PRNGKey(0)
    k_params, k_q, k_k, k_v = jax.random.split(key, 4)

    params = init_params(k_params, input_dim, embed_dim)
    xq = jax.random.normal(k_q, (B, S, input_dim), jnp.float32)
    xk = jax.random.normal(k_k, (B, S, input_dim), jnp.float32)
    xv = jax.random.normal(k_v, (B, S, input_dim), jnp.float32)

    ref = reference_mha(xq, xk, xv, params, num_heads)

    # f32 compute path: tight check of the kernel structure / online softmax
    # (exact reciprocal on this path).
    out_f32 = multihead_attention(xq, xk, xv, params, num_heads,
                                  compute_dtype=jnp.float32)
    out_f32 = jax.block_until_ready(out_f32)
    np.testing.assert_allclose(np.asarray(out_f32), np.asarray(ref),
                               rtol=1e-3, atol=1e-3)

    # bf16 compute path (recommended on v6e / v7x): looser tolerance.
    out_bf16 = multihead_attention(xq, xk, xv, params, num_heads,
                                   compute_dtype=jnp.bfloat16)
    out_bf16 = jax.block_until_ready(out_bf16)
    np.testing.assert_allclose(np.asarray(out_bf16), np.asarray(ref),
                               rtol=5e-2, atol=5e-2)

    print("KERNEL_OK")
</pallas_src>

<mosaic_0001>
module attributes {stable_mosaic.version = 11 : i64} {
  func.func @_qkv_proj_kernel(%arg0: i32, %arg1: i32, %arg2: memref<1x8x32xf32, #tpu.memory_space<vmem>>, %arg3: memref<1x8x32xf32, #tpu.memory_space<vmem>>, %arg4: memref<1x8x32xf32, #tpu.memory_space<vmem>>, %arg5: memref<32x32xf32, #tpu.memory_space<vmem>>, %arg6: memref<32x32xf32, #tpu.memory_space<vmem>>, %arg7: memref<32x32xf32, #tpu.memory_space<vmem>>, %arg8: memref<1x32xf32, #tpu.memory_space<vmem>>, %arg9: memref<1x32xf32, #tpu.memory_space<vmem>>, %arg10: memref<1x32xf32, #tpu.memory_space<vmem>>, %arg11: memref<1x8x32xf32, #tpu.memory_space<vmem>>, %arg12: memref<1x8x32xf32, #tpu.memory_space<vmem>>, %arg13: memref<1x8x32xf32, #tpu.memory_space<vmem>>) attributes {dimension_semantics = [#tpu.dimension_semantics<parallel>, #tpu.dimension_semantics<parallel>], iteration_bounds = array<i64: 2, 1>, scalar_prefetch = 0 : i64, scratch_operands = 0 : i64, tpu.core_type = #tpu.core_type<tc>, window_params = [{transform_indices = @transform_0, window_bounds = array<i64: 1, 8, 32>}, {transform_indices = @transform_1, window_bounds = array<i64: 1, 8, 32>}, {transform_indices = @transform_2, window_bounds = array<i64: 1, 8, 32>}, {pipeline_mode = #tpu.pipeline_mode<synchronous>, transform_indices = @transform_3, window_bounds = array<i64: 32, 32>}, {pipeline_mode = #tpu.pipeline_mode<synchronous>, transform_indices = @transform_4, window_bounds = array<i64: 32, 32>}, {pipeline_mode = #tpu.pipeline_mode<synchronous>, transform_indices = @transform_5, window_bounds = array<i64: 32, 32>}, {pipeline_mode = #tpu.pipeline_mode<synchronous>, transform_indices = @transform_6, window_bounds = array<i64: 1, 32>}, {pipeline_mode = #tpu.pipeline_mode<synchronous>, transform_indices = @transform_7, window_bounds = array<i64: 1, 32>}, {pipeline_mode = #tpu.pipeline_mode<synchronous>, transform_indices = @transform_8, window_bounds = array<i64: 1, 32>}, {transform_indices = @transform_9, window_bounds = array<i64: 1, 8, 32>}, {transform_indices = @transform_10, window_bounds = array<i64: 1, 8, 32>}, {transform_indices = @transform_11, window_bounds = array<i64: 1, 8, 32>}]} {
    %c0 = arith.constant 0 : index
    %c0_0 = arith.constant 0 : index
    %c0_1 = arith.constant 0 : index
    %0 = vector.load %arg2[%c0, %c0_0, %c0_1] : memref<1x8x32xf32, #tpu.memory_space<vmem>>, vector<1x8x32xf32>
    %1 = vector.shape_cast %0 : vector<1x8x32xf32> to vector<8x32xf32>
    %c0_2 = arith.constant 0 : index
    %c0_3 = arith.constant 0 : index
    %c0_4 = arith.constant 0 : index
    %2 = vector.load %arg3[%c0_2, %c0_3, %c0_4] : memref<1x8x32xf32, #tpu.memory_space<vmem>>, vector<1x8x32xf32>
    %3 = vector.shape_cast %2 : vector<1x8x32xf32> to vector<8x32xf32>
    %c0_5 = arith.constant 0 : index
    %c0_6 = arith.constant 0 : index
    %c0_7 = arith.constant 0 : index
    %4 = vector.load %arg4[%c0_5, %c0_6, %c0_7] : memref<1x8x32xf32, #tpu.memory_space<vmem>>, vector<1x8x32xf32>
    %5 = vector.shape_cast %4 : vector<1x8x32xf32> to vector<8x32xf32>
    %c0_8 = arith.constant 0 : index
    %c0_9 = arith.constant 0 : index
    %6 = vector.load %arg5[%c0_8, %c0_9] : memref<32x32xf32, #tpu.memory_space<vmem>>, vector<32x32xf32>
    %cst = arith.constant dense<0.000000e+00> : vector<8x32xf32>
    %7 = tpu.matmul %1, %6, %cst {dimension_numbers = #tpu.dot_dimension_numbers<[1], [0], [0], [1], [0, 0, 1, 1], [], []>} : vector<8x32xf32>, vector<32x32xf32>, vector<8x32xf32> -> vector<8x32xf32>
    %c0_10 = arith.constant 0 : index
    %c0_11 = arith.constant 0 : index
    %8 = vector.load %arg8[%c0_10, %c0_11] : memref<1x32xf32, #tpu.memory_space<vmem>>, vector<1x32xf32>
    %9 = vector.broadcast %8 : vector<1x32xf32> to vector<8x32xf32>
    %10 = arith.addf %7, %9 : vector<8x32xf32>
    %c0_12 = arith.constant 0 : index
    %c0_13 = arith.constant 0 : index
    %11 = vector.load %arg6[%c0_12, %c0_13] : memref<32x32xf32, #tpu.memory_space<vmem>>, vector<32x32xf32>
    %cst_14 = arith.constant dense<0.000000e+00> : vector<8x32xf32>
    %12 = tpu.matmul %3, %11, %cst_14 {dimension_numbers = #tpu.dot_dimension_numbers<[1], [0], [0], [1], [0, 0, 1, 1], [], []>} : vector<8x32xf32>, vector<32x32xf32>, vector<8x32xf32> -> vector<8x32xf32>
    %c0_15 = arith.constant 0 : index
    %c0_16 = arith.constant 0 : index
    %13 = vector.load %arg9[%c0_15, %c0_16] : memref<1x32xf32, #tpu.memory_space<vmem>>, vector<1x32xf32>
    %14 = vector.broadcast %13 : vector<1x32xf32> to vector<8x32xf32>
    %15 = arith.addf %12, %14 : vector<8x32xf32>
    %c0_17 = arith.constant 0 : index
    %c0_18 = arith.constant 0 : index
    %16 = vector.load %arg7[%c0_17, %c0_18] : memref<32x32xf32, #tpu.memory_space<vmem>>, vector<32x32xf32>
    %cst_19 = arith.constant dense<0.000000e+00> : vector<8x32xf32>
    %17 = tpu.matmul %5, %16, %cst_19 {dimension_numbers = #tpu.dot_dimension_numbers<[1], [0], [0], [1], [0, 0, 1, 1], [], []>} : vector<8x32xf32>, vector<32x32xf32>, vector<8x32xf32> -> vector<8x32xf32>
    %c0_20 = arith.constant 0 : index
    %c0_21 = arith.constant 0 : index
    %18 = vector.load %arg10[%c0_20, %c0_21] : memref<1x32xf32, #tpu.memory_space<vmem>>, vector<1x32xf32>
    %19 = vector.broadcast %18 : vector<1x32xf32> to vector<8x32xf32>
    %20 = arith.addf %17, %19 : vector<8x32xf32>
    %cst_22 = arith.constant 0.353553385 : f32
    %21 = vector.broadcast %cst_22 : f32 to vector<8x32xf32>
    %22 = arith.mulf %10, %21 : vector<8x32xf32>
    %c0_23 = arith.constant 0 : index
    %c0_24 = arith.constant 0 : index
    %c0_25 = arith.constant 0 : index
    %23 = vector.load %arg11[%c0_23, %c0_24, %c0_25] : memref<1x8x32xf32, #tpu.memory_space<vmem>>, vector<1x8x32xf32>
    %24 = vector.shape_cast %23 : vector<1x8x32xf32> to vector<8x32xf32>
    %25 = vector.shape_cast %22 : vector<8x32xf32> to vector<1x8x32xf32>
    tpu.vector_store %arg11[%c0_23, %c0_24, %c0_25], %25 {strides = array<i32>} : memref<1x8x32xf32, #tpu.memory_space<vmem>>, vector<1x8x32xf32>,
    %c0_26 = arith.constant 0 : index
    %c0_27 = arith.constant 0 : index
    %c0_28 = arith.constant 0 : index
    %26 = vector.load %arg12[%c0_26, %c0_27, %c0_28] : memref<1x8x32xf32, #tpu.memory_space<vmem>>, vector<1x8x32xf32>
    %27 = vector.shape_cast %26 : vector<1x8x32xf32> to vector<8x32xf32>
    %28 = vector.shape_cast %15 : vector<8x32xf32> to vector<1x8x32xf32>
    tpu.vector_store %arg12[%c0_26, %c0_27, %c0_28], %28 {strides = array<i32>} : memref<1x8x32xf32, #tpu.memory_space<vmem>>, vector<1x8x32xf32>,
    %c0_29 = arith.constant 0 : index
    %c0_30 = arith.constant 0 : index
    %c0_31 = arith.constant 0 : index
    %29 = vector.load %arg13[%c0_29, %c0_30, %c0_31] : memref<1x8x32xf32, #tpu.memory_space<vmem>>, vector<1x8x32xf32>
    %30 = vector.shape_cast %29 : vector<1x8x32xf32> to vector<8x32xf32>
    %31 = vector.shape_cast %20 : vector<8x32xf32> to vector<1x8x32xf32>
    tpu.vector_store %arg13[%c0_29, %c0_30, %c0_31], %31 {strides = array<i32>} : memref<1x8x32xf32, #tpu.memory_space<vmem>>, vector<1x8x32xf32>,
    return
  }
  func.func @transform_0(%arg0: i32, %arg1: i32) -> (i32, i32, i32) {
    %c0_i32 = arith.constant 0 : i32
    %c0_i32_0 = arith.constant 0 : i32
    return %arg0, %arg1, %c0_i32 : i32, i32, i32
  }
  func.func @transform_1(%arg0: i32, %arg1: i32) -> (i32, i32, i32) {
    %c0_i32 = arith.constant 0 : i32
    %c0_i32_0 = arith.constant 0 : i32
    return %arg0, %arg1, %c0_i32 : i32, i32, i32
  }
  func.func @transform_2(%arg0: i32, %arg1: i32) -> (i32, i32, i32) {
    %c0_i32 = arith.constant 0 : i32
    %c0_i32_0 = arith.constant 0 : i32
    return %arg0, %arg1, %c0_i32 : i32, i32, i32
  }
  func.func @transform_3(%arg0: i32, %arg1: i32) -> (i32, i32) {
    %c0_i32 = arith.constant 0 : i32
    %c0_i32_0 = arith.constant 0 : i32
    %c0_i32_1 = arith.constant 0 : i32
    return %c0_i32, %c0_i32_0 : i32, i32
  }
  func.func @transform_4(%arg0: i32, %arg1: i32) -> (i32, i32) {
    %c0_i32 = arith.constant 0 : i32
    %c0_i32_0 = arith.constant 0 : i32
    %c0_i32_1 = arith.constant 0 : i32
    return %c0_i32, %c0_i32_0 : i32, i32
  }
  func.func @transform_5(%arg0: i32, %arg1: i32) -> (i32, i32) {
    %c0_i32 = arith.constant 0 : i32
    %c0_i32_0 = arith.constant 0 : i32
    %c0_i32_1 = arith.constant 0 : i32
    return %c0_i32, %c0_i32_0 : i32, i32
  }
  func.func @transform_6(%arg0: i32, %arg1: i32) -> (i32, i32) {
    %c0_i32 = arith.constant 0 : i32
    %c0_i32_0 = arith.constant 0 : i32
    %c0_i32_1 = arith.constant 0 : i32
    return %c0_i32, %c0_i32_0 : i32, i32
  }
  func.func @transform_7(%arg0: i32, %arg1: i32) -> (i32, i32) {
    %c0_i32 = arith.constant 0 : i32
    %c0_i32_0 = arith.constant 0 : i32
    %c0_i32_1 = arith.constant 0 : i32
    return %c0_i32, %c0_i32_0 : i32, i32
  }
  func.func @transform_8(%arg0: i32, %arg1: i32) -> (i32, i32) {
    %c0_i32 = arith.constant 0 : i32
    %c0_i32_0 = arith.constant 0 : i32
    %c0_i32_1 = arith.constant 0 : i32
    return %c0_i32, %c0_i32_0 : i32, i32
  }
  func.func @transform_9(%arg0: i32, %arg1: i32) -> (i32, i32, i32) {
    %c0_i32 = arith.constant 0 : i32
    %c0_i32_0 = arith.constant 0 : i32
    return %arg0, %arg1, %c0_i32 : i32, i32, i32
  }
  func.func @transform_10(%arg0: i32, %arg1: i32) -> (i32, i32, i32) {
    %c0_i32 = arith.constant 0 : i32
    %c0_i32_0 = arith.constant 0 : i32
    return %arg0, %arg1, %c0_i32 : i32, i32, i32
  }
  func.func @transform_11(%arg0: i32, %arg1: i32) -> (i32, i32, i32) {
    %c0_i32 = arith.constant 0 : i32
    %c0_i32_0 = arith.constant 0 : i32
    return %arg0, %arg1, %c0_i32 : i32, i32, i32
  }
}

</mosaic_0001>

<llo_original>
// kernel: tpu_custom_call.1
$region0: #{tpu_custom_call.1}
  #allocation0 [shape = 'u32[]', space=smem, size = 0x4, offset = 0x4, fixed_abs, tag = 'smem constant byte address 0x4 - core index']
  #allocation1 [shape = 'u32[144,128]{1,0:T(1,128)}', space=vmem, size = 0x12000, scoped, tag = 'internal scratch']
  %s0 = inlined_call_operand.hbm [shape: f32[2,8,32], index: 0, kind: input, shape index: {}]
  %s1 = inlined_call_operand.hbm [shape: f32[2,8,32], index: 1, kind: input, shape index: {}]
  %s2 = inlined_call_operand.hbm [shape: f32[2,8,32], index: 2, kind: input, shape index: {}]
  %s3 = inlined_call_operand.hbm [shape: f32[32,32], index: 3, kind: input, shape index: {}]
  %s4 = inlined_call_operand.hbm [shape: f32[32,32], index: 4, kind: input, shape index: {}]
  %s5 = inlined_call_operand.hbm [shape: f32[32,32], index: 5, kind: input, shape index: {}]
  %s6 = inlined_call_operand.vmem [shape: f32[1,32], index: 6, kind: input, shape index: {}]
  %s7 = inlined_call_operand.vmem [shape: f32[1,32], index: 7, kind: input, shape index: {}]
  %s8 = inlined_call_operand.vmem [shape: f32[1,32], index: 8, kind: input, shape index: {}]
  %s9 = inlined_call_operand.hbm [shape: f32[2,8,32], index: 9, kind: output, shape index: {0}]
  %s10 = inlined_call_operand.hbm [shape: f32[2,8,32], index: 10, kind: output, shape index: {1}]
  %s11 = inlined_call_operand.hbm [shape: f32[2,8,32], index: 11, kind: output, shape index: {2}]
  %12 = xla_tuple %s9, %s10, %s11
  %s13 = sld [smem:[#allocation0]]
  $region109: #{tpu_custom_call.1} parent=0
    _
  %s15 = ssub.s32 1, %s13
  %s16 = scalar_select 0, %s15, %s13
  $region1: #{tpu_custom_call.1} parent=0
    #allocation2 [shape = 'u8[8192]{0}', space=vmem, size = 0x2000, scoped, tag = 'input window, operand 0']
    #allocation3 [shape = 's32[2]{0}', space=sflag, size = 0x8, scoped, tag = 'scoped memory for tpu_custom_call.1']
    #allocation4 [shape = 's32[2]{0}', space=sflag, size = 0x8, scoped, tag = 'scoped memory for tpu_custom_call.1']
    #allocation5 [shape = 'u8[8192]{0}', space=vmem, size = 0x2000, scoped, tag = 'input window, operand 1']
    #allocation6 [shape = 's32[2]{0}', space=sflag, size = 0x8, scoped, tag = 'scoped memory for tpu_custom_call.1']
    #allocation7 [shape = 'u8[8192]{0}', space=vmem, size = 0x2000, scoped, tag = 'input window, operand 2']
    #allocation8 [shape = 'u8[16384]{0}', space=vmem, size = 0x4000, scoped, tag = 'input window, operand 3, single buffered']
    #allocation9 [shape = 's32[1]{0}', space=sflag, size = 0x4, scoped, tag = 'scoped memory for tpu_custom_call.1']
    #allocation10 [shape = 'u8[16384]{0}', space=vmem, size = 0x4000, scoped, tag = 'input window, operand 4, single buffered']
    #allocation11 [shape = 'u8[16384]{0}', space=vmem, size = 0x4000, scoped, tag = 'input window, operand 5, single buffered']
    #allocation12 [shape = 's32[1]{0}', space=sflag, size = 0x4, scoped, tag = 'scoped memory for tpu_custom_call.1']
    #allocation13 [shape = 'u8[8192]{0}', space=vmem, size = 0x2000, scoped, tag = 'output window, operand 0']
    #allocation14 [shape = 'u8[8192]{0}', space=vmem, size = 0x2000, scoped, tag = 'output window, operand 1']
    #allocation15 [shape = 's32[2]{0}', space=sflag, size = 0x8, scoped, tag = 'scoped memory for tpu_custom_call.1']
    #allocation16 [shape = 'u8[8192]{0}', space=vmem, size = 0x2000, scoped, tag = 'output window, operand 2']
    %17 = vsyncpa [#allocation3], 0
    %s18 = scalar_lea.sflag [#allocation3], 1
    %19 = vsyncpa %s18, 0
    %20 = vsyncpa [#allocation6], 0
    %s21 = scalar_lea.sflag [#allocation6], 1
    %22 = vsyncpa %s21, 0
    %23 = vsyncpa [#allocation9], 0
    %24 = vsyncpa [#allocation12], 0
    %25 = vsyncpa [#allocation4], 0
    %s26 = scalar_lea.sflag [#allocation4], 1
    %27 = vsyncpa %s26, 0
    %28 = vsyncpa [#allocation15], 0
    %s29 = scalar_lea.sflag [#allocation15], 1
    %30 = vsyncpa %s29, 0
    loop: start=0, step=1, limit=4
    $region2: #{tpu_custom_call.1} parent=1 // loop_pre_header
      _
    $region3: #{tpu_custom_call.1} parent=1 // loop_header
      %s32 = sphi 0, %s36
      %p33 = scmp.ge.s32.totalorder %s32, 4
      %s39 = sphi 0, %s51
      %s40 = sphi 0, %s47
      %s41 = sphi 0, %s39
      %s42 = sphi 0, %s40
      %s43 = sphi 0, %s41
      %s44 = sphi 0, %s42
      %s56 = sphi 0, %s58
      %s59 = sphi 0, %s56
      %s60 = sphi 0, %s59
      %s76 = sphi 0, %s60
      %s84 = sphi 0, %s86
      %s87 = sphi 0, %s84
      %s88 = sphi 0, %s87
      %s104 = sphi 0, %s88
      %s112 = sphi 0, %s114
      %s115 = sphi 0, %s112
      %s116 = sphi 0, %s115
      %s132 = sphi 0, %s116
      %s136 = sphi 0, %s136
      %s138 = sphi 0, %s136
      %s139 = sphi 0, %s138
      %s153 = sphi 0, %s139
      %s157 = sphi 0, %s157
      %s159 = sphi 0, %s157
      %s160 = sphi 0, %s159
      %s174 = sphi 0, %s160
      %s178 = sphi 0, %s178
      %s180 = sphi 0, %s178
      %s181 = sphi 0, %s180
      %s195 = sphi 0, %s181
      %s199 = sphi 0, %s199
      %s201 = sphi 0, %s199
      %s202 = sphi 0, %s201
      %s216 = sphi 0, %s202
      %s220 = sphi 0, %s220
      %s222 = sphi 0, %s220
      %s223 = sphi 0, %s222
      %s237 = sphi 0, %s223
      %s241 = sphi 0, %s241
      %s243 = sphi 0, %s241
      %s244 = sphi 0, %s243
      %s258 = sphi 0, %s244
      %s266 = sphi 0, %s268
      %s269 = sphi 0, %s266
      %s270 = sphi 0, %s269
      %s286 = sphi 0, %s270
      %s294 = sphi 0, %s296
      %s297 = sphi 0, %s294
      %s298 = sphi 0, %s297
      %s314 = sphi 0, %s298
      %s322 = sphi 0, %s324
      %s325 = sphi 0, %s322
      %s326 = sphi 0, %s325
      %s342 = sphi 0, %s326
    $region4: #{tpu_custom_call.1} parent=1 // loop_header_branch
      %35 = sbr.rel (%p33) target = $region8
    $region5: #{tpu_custom_call.1} parent=1 // loop_body
      %s37 = ssub.s32 %s32, 1
      %s38 = ssub.s32 %s32, 2
      %s45 = sadd.s32 1, %s40
      %p46 = scmp.ge.s32.totalorder %s45, 1
      %s47 = scalar_select %p46, 0, %s45
      %s48 = sadd.s32 1, %s39
      %s49 = scalar_select %p46, %s48, %s39
      %p50 = scmp.ge.s32.totalorder %s49, 2
      %s51 = scalar_select %p50, 0, %s49
      %s52 = ssub.s32 %s39, %s51
      %s53 = ssub.s32 %s40, %s47
      %s54 = sor.u32 %s52, %s53
      %p55 = scmp.eq.s32.totalorder %s54, 0
      %s57 = sadd.s32 %s56, 1
      %s58 = scalar_select %p55, %s56, %s57
      %p61 = pneg %p55
      %p62 = scmp.eq.s32.totalorder %s32, 1
      %p63 = por %p61, %p62
      %p64 = scmp.ne.s32.totalorder %s56, %s59
      %p65 = scmp.eq.s32.totalorder %s32, 0
      %p66 = por %p64, %p65
      %p67 = scmp.ne.s32.totalorder %s56, %s59
      %p68 = scmp.eq.s32.totalorder %s37, 1
      %p69 = por %p67, %p68
      %p70 = scmp.ne.s32.totalorder %s59, %s60
      %p71 = scmp.eq.s32.totalorder %s37, 0
      %p72 = por %p70, %p71
      %p73 = scmp.ne.s32.totalorder %s59, %s60
      %p74 = scmp.eq.s32.totalorder %s38, 1
      %p75 = por %p73, %p74
      %p77 = scmp.ne.s32.totalorder %s60, %s76
      %p78 = scmp.eq.s32.totalorder %s38, 0
      %p79 = por %p77, %p78
      %s80 = ssub.s32 %s39, %s51
      %s81 = ssub.s32 %s40, %s47
      %s82 = sor.u32 %s80, %s81
      %p83 = scmp.eq.s32.totalorder %s82, 0
      %s85 = sadd.s32 %s84, 1
      %s86 = scalar_select %p83, %s84, %s85
      %p89 = pneg %p83
      %p90 = scmp.eq.s32.totalorder %s32, 1
      %p91 = por %p89, %p90
      %p92 = scmp.ne.s32.totalorder %s84, %s87
      %p93 = scmp.eq.s32.totalorder %s32, 0
      %p94 = por %p92, %p93
      %p95 = scmp.ne.s32.totalorder %s84, %s87
      %p96 = scmp.eq.s32.totalorder %s37, 1
      %p97 = por %p95, %p96
      %p98 = scmp.ne.s32.totalorder %s87, %s88
      %p99 = scmp.eq.s32.totalorder %s37, 0
      %p100 = por %p98, %p99
      %p101 = scmp.ne.s32.totalorder %s87, %s88
      %p102 = scmp.eq.s32.totalorder %s38, 1
      %p103 = por %p101, %p102
      %p105 = scmp.ne.s32.totalorder %s88, %s104
      %p106 = scmp.eq.s32.totalorder %s38, 0
      %p107 = por %p105, %p106
      %s108 = ssub.s32 %s39, %s51
      %s109 = ssub.s32 %s40, %s47
      %s110 = sor.u32 %s108, %s109
      %p111 = scmp.eq.s32.totalorder %s110, 0
      %s113 = sadd.s32 %s112, 1
      %s114 = scalar_select %p111, %s112, %s113
      %p117 = pneg %p111
      %p118 = scmp.eq.s32.totalorder %s32, 1
      %p119 = por %p117, %p118
      %p120 = scmp.ne.s32.totalorder %s112, %s115
      %p121 = scmp.eq.s32.totalorder %s32, 0
      %p122 = por %p120, %p121
      %p123 = scmp.ne.s32.totalorder %s112, %s115
      %p124 = scmp.eq.s32.totalorder %s37, 1
      %p125 = por %p123, %p124
      %p126 = scmp.ne.s32.totalorder %s115, %s116
      %p127 = scmp.eq.s32.totalorder %s37, 0
      %p128 = por %p126, %p127
      %p129 = scmp.ne.s32.totalorder %s115, %s116
      %p130 = scmp.eq.s32.totalorder %s38, 1
      %p131 = por %p129, %p130
      %p133 = scmp.ne.s32.totalorder %s116, %s132
      %p134 = scmp.eq.s32.totalorder %s38, 0
      %p135 = por %p133, %p134
      %s137 = sadd.s32 %s136, 1
      %p140 = scmp.eq.s32.totalorder %s32, 1
      %p141 = scmp.ne.s32.totalorder %s136, %s138
      %p142 = scmp.eq.s32.totalorder %s32, 0
      %p143 = por %p141, %p142
      %p144 = scmp.ne.s32.totalorder %s136, %s138
      %p145 = scmp.eq.s32.totalorder %s37, 1
      %p146 = por %p144, %p145
      %p147 = scmp.ne.s32.totalorder %s138, %s139
      %p148 = scmp.eq.s32.totalorder %s37, 0
      %p149 = por %p147, %p148
      %p150 = scmp.ne.s32.totalorder %s138, %s139
      %p151 = scmp.eq.s32.totalorder %s38, 1
      %p152 = por %p150, %p151
      %p154 = scmp.ne.s32.totalorder %s139, %s153
      %p155 = scmp.eq.s32.totalorder %s38, 0
      %p156 = por %p154, %p155
      %s158 = sadd.s32 %s157, 1
      %p161 = scmp.eq.s32.totalorder %s32, 1
      %p162 = scmp.ne.s32.totalorder %s157, %s159
      %p163 = scmp.eq.s32.totalorder %s32, 0
      %p164 = por %p162, %p163
      %p165 = scmp.ne.s32.totalorder %s157, %s159
      %p166 = scmp.eq.s32.totalorder %s37, 1
      %p167 = por %p165, %p166
      %p168 = scmp.ne.s32.totalorder %s159, %s160
      %p169 = scmp.eq.s32.totalorder %s37, 0
      %p170 = por %p168, %p169
      %p171 = scmp.ne.s32.totalorder %s159, %s160
      %p172 = scmp.eq.s32.totalorder %s38, 1
      %p173 = por %p171, %p172
      %p175 = scmp.ne.s32.totalorder %s160, %s174
      %p176 = scmp.eq.s32.totalorder %s38, 0
      %p177 = por %p175, %p176
      %s179 = sadd.s32 %s178, 1
      %p182 = scmp.eq.s32.totalorder %s32, 1
      %p183 = scmp.ne.s32.totalorder %s178, %s180
      %p184 = scmp.eq.s32.totalorder %s32, 0
      %p185 = por %p183, %p184
      %p186 = scmp.ne.s32.totalorder %s178, %s180
      %p187 = scmp.eq.s32.totalorder %s37, 1
      %p188 = por %p186, %p187
      %p189 = scmp.ne.s32.totalorder %s180, %s181
      %p190 = scmp.eq.s32.totalorder %s37, 0
      %p191 = por %p189, %p190
      %p192 = scmp.ne.s32.totalorder %s180, %s181
      %p193 = scmp.eq.s32.totalorder %s38, 1
      %p194 = por %p192, %p193
      %p196 = scmp.ne.s32.totalorder %s181, %s195
      %p197 = scmp.eq.s32.totalorder %s38, 0
      %p198 = por %p196, %p197
      %s200 = sadd.s32 %s199, 1
      %p203 = scmp.eq.s32.totalorder %s32, 1
      %p204 = scmp.ne.s32.totalorder %s199, %s201
      %p205 = scmp.eq.s32.totalorder %s32, 0
      %p206 = por %p204, %p205
      %p207 = scmp.ne.s32.totalorder %s199, %s201
      %p208 = scmp.eq.s32.totalorder %s37, 1
      %p209 = por %p207, %p208
      %p210 = scmp.ne.s32.totalorder %s201, %s202
      %p211 = scmp.eq.s32.totalorder %s37, 0
      %p212 = por %p210, %p211
      %p213 = scmp.ne.s32.totalorder %s201, %s202
      %p214 = scmp.eq.s32.totalorder %s38, 1
      %p215 = por %p213, %p214
      %p217 = scmp.ne.s32.totalorder %s202, %s216
      %p218 = scmp.eq.s32.totalorder %s38, 0
      %p219 = por %p217, %p218
      %s221 = sadd.s32 %s220, 1
      %p224 = scmp.eq.s32.totalorder %s32, 1
      %p225 = scmp.ne.s32.totalorder %s220, %s222
      %p226 = scmp.eq.s32.totalorder %s32, 0
      %p227 = por %p225, %p226
      %p228 = scmp.ne.s32.totalorder %s220, %s222
      %p229 = scmp.eq.s32.totalorder %s37, 1
      %p230 = por %p228, %p229
      %p231 = scmp.ne.s32.totalorder %s222, %s223
      %p232 = scmp.eq.s32.totalorder %s37, 0
      %p233 = por %p231, %p232
      %p234 = scmp.ne.s32.totalorder %s222, %s223
      %p235 = scmp.eq.s32.totalorder %s38, 1
      %p236 = por %p234, %p235
      %p238 = scmp.ne.s32.totalorder %s223, %s237
      %p239 = scmp.eq.s32.totalorder %s38, 0
      %p240 = por %p238, %p239
      %s242 = sadd.s32 %s241, 1
      %p245 = scmp.eq.s32.totalorder %s32, 1
      %p246 = scmp.ne.s32.totalorder %s241, %s243
      %p247 = scmp.eq.s32.totalorder %s32, 0
      %p248 = por %p246, %p247
      %p249 = scmp.ne.s32.totalorder %s241, %s243
      %p250 = scmp.eq.s32.totalorder %s37, 1
      %p251 = por %p249, %p250
      %p252 = scmp.ne.s32.totalorder %s243, %s244
      %p253 = scmp.eq.s32.totalorder %s37, 0
      %p254 = por %p252, %p253
      %p255 = scmp.ne.s32.totalorder %s243, %s244
      %p256 = scmp.eq.s32.totalorder %s38, 1
      %p257 = por %p255, %p256
      %p259 = scmp.ne.s32.totalorder %s244, %s258
      %p260 = scmp.eq.s32.totalorder %s38, 0
      %p261 = por %p259, %p260
      %s262 = ssub.s32 %s39, %s51
      %s263 = ssub.s32 %s40, %s47
      %s264 = sor.u32 %s262, %s263
      %p265 = scmp.eq.s32.totalorder %s264, 0
      %s267 = sadd.s32 %s266, 1
      %s268 = scalar_select %p265, %s266, %s267
      %p271 = pneg %p265
      %p272 = scmp.eq.s32.totalorder %s32, 1
      %p273 = por %p271, %p272
      %p274 = scmp.ne.s32.totalorder %s266, %s269
      %p275 = scmp.eq.s32.totalorder %s32, 0
      %p276 = por %p274, %p275
      %p277 = scmp.ne.s32.totalorder %s266, %s269
      %p278 = scmp.eq.s32.totalorder %s37, 1
      %p279 = por %p277, %p278
      %p280 = scmp.ne.s32.totalorder %s269, %s270
      %p281 = scmp.eq.s32.totalorder %s37, 0
      %p282 = por %p280, %p281
      %p283 = scmp.ne.s32.totalorder %s269, %s270
      %p284 = scmp.eq.s32.totalorder %s38, 1
      %p285 = por %p283, %p284
      %p287 = scmp.ne.s32.totalorder %s270, %s286
      %p288 = scmp.eq.s32.totalorder %s38, 0
      %p289 = por %p287, %p288
      %s290 = ssub.s32 %s39, %s51
      %s291 = ssub.s32 %s40, %s47
      %s292 = sor.u32 %s290, %s291
      %p293 = scmp.eq.s32.totalorder %s292, 0
      %s295 = sadd.s32 %s294, 1
      %s296 = scalar_select %p293, %s294, %s295
      %p299 = pneg %p293
      %p300 = scmp.eq.s32.totalorder %s32, 1
      %p301 = por %p299, %p300
      %p302 = scmp.ne.s32.totalorder %s294, %s297
      %p303 = scmp.eq.s32.totalorder %s32, 0
      %p304 = por %p302, %p303
      %p305 = scmp.ne.s32.totalorder %s294, %s297
      %p306 = scmp.eq.s32.totalorder %s37, 1
      %p307 = por %p305, %p306
      %p308 = scmp.ne.s32.totalorder %s297, %s298
      %p309 = scmp.eq.s32.totalorder %s37, 0
      %p310 = por %p308, %p309
      %p311 = scmp.ne.s32.totalorder %s297, %s298
      %p312 = scmp.eq.s32.totalorder %s38, 1
      %p313 = por %p311, %p312
      %p315 = scmp.ne.s32.totalorder %s298, %s314
      %p316 = scmp.eq.s32.totalorder %s38, 0
      %p317 = por %p315, %p316
      %s318 = ssub.s32 %s39, %s51
      %s319 = ssub.s32 %s40, %s47
      %s320 = sor.u32 %s318, %s319
      %p321 = scmp.eq.s32.totalorder %s320, 0
      %s323 = sadd.s32 %s322, 1
      %s324 = scalar_select %p321, %s322, %s323
      %p327 = pneg %p321
      %p328 = scmp.eq.s32.totalorder %s32, 1
      %p329 = por %p327, %p328
      %p330 = scmp.ne.s32.totalorder %s322, %s325
      %p331 = scmp.eq.s32.totalorder %s32, 0
      %p332 = por %p330, %p331
      %p333 = scmp.ne.s32.totalorder %s322, %s325
      %p334 = scmp.eq.s32.totalorder %s37, 1
      %p335 = por %p333, %p334
      %p336 = scmp.ne.s32.totalorder %s325, %s326
      %p337 = scmp.eq.s32.totalorder %s37, 0
      %p338 = por %p336, %p337
      %p339 = scmp.ne.s32.totalorder %s325, %s326
      %p340 = scmp.eq.s32.totalorder %s38, 1
      %p341 = por %p339, %p340
      %p343 = scmp.ne.s32.totalorder %s326, %s342
      %p344 = scmp.eq.s32.totalorder %s38, 0
      %p345 = por %p343, %p344
      %p346 = scmp.le.s32.totalorder 1, %s32
      %p347 = scmp.lt.s32.totalorder %s32, 3
      %p348 = pnand %p346, %p347
      %p349 = pneg %p348
      // Predicated region
      $region9: #{tpu_custom_call.1} parent=5 // pred_check
        _
      $region10: #{tpu_custom_call.1} parent=5 // pred_check_branch
        %351 = sbr.rel (%p348) target = $region12
      $region11: #{tpu_custom_call.1} parent=5 // pred_region
        %s352 = ssub.s32 %s32, 1
        // Predicated region
        $region13: #{tpu_custom_call.1} parent=11 // pred_check
          %p353 = pneg %p149
        $region14: #{tpu_custom_call.1} parent=11 // pred_check_branch
          %355 = sbr.rel (%p353) target = $region16
        $region15: #{tpu_custom_call.1} parent=11 // pred_region
          %s357 = ssub.s32 512, 512
          %358 = vsyncadd [#allocation9], %s357
          %s359 = sshll.u32 [#allocation8], 4
          %s360 = int_to_ptr.vmem [resolvable:$true] %s359
          %365 = dma.hbm_to_vmem [thread:$0]  %s3, 512, %s360, [#allocation9], 128, 128, 8
        $region16: #{tpu_custom_call.1} parent=11 // pred_fallthru
          _
        // Predicated region
        $region17: #{tpu_custom_call.1} parent=11 // pred_check
          %p366 = pneg %p170
        $region18: #{tpu_custom_call.1} parent=11 // pred_check_branch
          %368 = sbr.rel (%p366) target = $region20
        $region19: #{tpu_custom_call.1} parent=11 // pred_region
          %s370 = ssub.s32 512, 512
          %371 = vsyncadd [#allocation9], %s370
          %s372 = sshll.u32 [#allocation10], 4
          %s373 = int_to_ptr.vmem [resolvable:$true] %s372
          %378 = dma.hbm_to_vmem [thread:$0]  %s4, 512, %s373, [#allocation9], 128, 128, 8
        $region20: #{tpu_custom_call.1} parent=11 // pred_fallthru
          _
        // Predicated region
        $region21: #{tpu_custom_call.1} parent=11 // pred_check
          %p379 = pneg %p191
        $region22: #{tpu_custom_call.1} parent=11 // pred_check_branch
          %381 = sbr.rel (%p379) target = $region24
        $region23: #{tpu_custom_call.1} parent=11 // pred_region
          %s383 = ssub.s32 512, 512
          %384 = vsyncadd [#allocation12], %s383
          %s385 = sshll.u32 [#allocation11], 4
          %s386 = int_to_ptr.vmem [resolvable:$true] %s385
          %391 = dma.hbm_to_vmem [thread:$0]  %s5, 512, %s386, [#allocation12], 128, 128, 8
        $region24: #{tpu_custom_call.1} parent=11 // pred_fallthru
          _
        // Predicated region
        $region25: #{tpu_custom_call.1} parent=11 // pred_check
          %p392 = pneg %p212
        $region26: #{tpu_custom_call.1} parent=11 // pred_check_branch
          %394 = sbr.rel (%p392) target = $region28
        $region27: #{tpu_custom_call.1} parent=11 // pred_region
          _
        $region28: #{tpu_custom_call.1} parent=11 // pred_fallthru
          _
        // Predicated region
        $region29: #{tpu_custom_call.1} parent=11 // pred_check
          %p395 = pneg %p233
        $region30: #{tpu_custom_call.1} parent=11 // pred_check_branch
          %397 = sbr.rel (%p395) target = $region32
        $region31: #{tpu_custom_call.1} parent=11 // pred_region
          _
        $region32: #{tpu_custom_call.1} parent=11 // pred_fallthru
          _
        // Predicated region
        $region33: #{tpu_custom_call.1} parent=11 // pred_check
          %p398 = pneg %p254
        $region34: #{tpu_custom_call.1} parent=11 // pred_check_branch
          %400 = sbr.rel (%p398) target = $region36
        $region35: #{tpu_custom_call.1} parent=11 // pred_region
          _
        $region36: #{tpu_custom_call.1} parent=11 // pred_fallthru
          _
      $region12: #{tpu_custom_call.1} parent=5 // pred_fallthru
        _
      %p401 = scmp.lt.s32.totalorder %s32, 2
      // Predicated region
      $region37: #{tpu_custom_call.1} parent=5 // pred_check
        %p402 = pneg %p401
      $region38: #{tpu_custom_call.1} parent=5 // pred_check_branch
        %404 = sbr.rel (%p402) target = $region40
      $region39: #{tpu_custom_call.1} parent=5 // pred_region
        // Predicated region
        $region41: #{tpu_custom_call.1} parent=39 // pred_check
          %p405 = pneg %p66
        $region42: #{tpu_custom_call.1} parent=39 // pred_check_branch
          %407 = sbr.rel (%p405) target = $region44
        $region43: #{tpu_custom_call.1} parent=39 // pred_region
          %s408 = sand.u32 %s56, 1
          %s409 = scalar_lea.sflag [#allocation3], %s408
          %s410 = sand.u32 %s56, 1
          %s411 = smul.addr %s410, 8
          %s412 = scalar_lea.vmem [#allocation2], %s411
          %s414 = ssub.s32 128, 128
          %415 = vsyncadd %s409, %s414
          %s416 = sadd.s32 %s40, %s39
          %s417 = smul.addr %s416, 128
          %s418 = scalar_lea.hbm %s0, %s417
          %s420 = sshll.u32 %s412, 4
          %s421 = int_to_ptr.vmem [resolvable:$true] %s420
          %423 = dma.hbm_to_vmem [thread:$0]  %s418, 128, %s421, %s409
        $region44: #{tpu_custom_call.1} parent=39 // pred_fallthru
          _
        // Predicated region
        $region45: #{tpu_custom_call.1} parent=39 // pred_check
          %p424 = pneg %p94
        $region46: #{tpu_custom_call.1} parent=39 // pred_check_branch
          %426 = sbr.rel (%p424) target = $region48
        $region47: #{tpu_custom_call.1} parent=39 // pred_region
          %s427 = sand.u32 %s32, 1
          %s428 = scalar_lea.sflag [#allocation6], %s427
          %s429 = sand.u32 %s84, 1
          %s430 = smul.addr %s429, 8
          %s431 = scalar_lea.vmem [#allocation5], %s430
          %s433 = ssub.s32 128, 128
          %434 = vsyncadd %s428, %s433
          %s435 = sadd.s32 %s40, %s39
          %s436 = smul.addr %s435, 128
          %s437 = scalar_lea.hbm %s1, %s436
          %s439 = sshll.u32 %s431, 4
          %s440 = int_to_ptr.vmem [resolvable:$true] %s439
          %442 = dma.hbm_to_vmem [thread:$0]  %s437, 128, %s440, %s428
        $region48: #{tpu_custom_call.1} parent=39 // pred_fallthru
          _
        // Predicated region
        $region49: #{tpu_custom_call.1} parent=39 // pred_check
          %p443 = pneg %p122
        $region50: #{tpu_custom_call.1} parent=39 // pred_check_branch
          %445 = sbr.rel (%p443) target = $region52
        $region51: #{tpu_custom_call.1} parent=39 // pred_region
          %s446 = sand.u32 %s32, 1
          %s447 = scalar_lea.sflag [#allocation6], %s446
          %s448 = sand.u32 %s112, 1
          %s449 = smul.addr %s448, 8
          %s450 = scalar_lea.vmem [#allocation7], %s449
          %s452 = ssub.s32 128, 128
          %453 = vsyncadd %s447, %s452
          %s454 = sadd.s32 %s40, %s39
          %s455 = smul.addr %s454, 128
          %s456 = scalar_lea.hbm %s2, %s455
          %s458 = sshll.u32 %s450, 4
          %s459 = int_to_ptr.vmem [resolvable:$true] %s458
          %461 = dma.hbm_to_vmem [thread:$0]  %s456, 128, %s459, %s447
        $region52: #{tpu_custom_call.1} parent=39 // pred_fallthru
          _
      $region40: #{tpu_custom_call.1} parent=5 // pred_fallthru
        _
      %p462 = scmp.le.s32.totalorder 1, %s32
      %p463 = scmp.lt.s32.totalorder %s32, 3
      %p464 = pnand %p462, %p463
      %p465 = pneg %p464
      // Predicated region
      $region53: #{tpu_custom_call.1} parent=5 // pred_check
        _
      $region54: #{tpu_custom_call.1} parent=5 // pred_check_branch
        %467 = sbr.rel (%p464) target = $region56
      $region55: #{tpu_custom_call.1} parent=5 // pred_region
        %s468 = ssub.s32 %s32, 1
        %s469 = sand.u32 %s59, 1
        %s470 = scalar_lea.sflag [#allocation3], %s469
        %s471 = sand.u32 %s59, 1
        %s472 = smul.addr %s471, 8
        %s473 = scalar_lea.vmem [#allocation2], %s472
        // Predicated region
        $region57: #{tpu_custom_call.1} parent=55 // pred_check
          %p474 = pneg %p72
        $region58: #{tpu_custom_call.1} parent=55 // pred_check_branch
          %476 = sbr.rel (%p474) target = $region60
        $region59: #{tpu_custom_call.1} parent=55 // pred_region
          %477 = dma.done %s470, 128
        $region60: #{tpu_custom_call.1} parent=55 // pred_fallthru
          _
        %s478 = sand.u32 %s37, 1
        %s479 = scalar_lea.sflag [#allocation6], %s478
        %s480 = sand.u32 %s87, 1
        %s481 = smul.addr %s480, 8
        %s482 = scalar_lea.vmem [#allocation5], %s481
        // Predicated region
        $region61: #{tpu_custom_call.1} parent=55 // pred_check
          %p483 = pneg %p100
        $region62: #{tpu_custom_call.1} parent=55 // pred_check_branch
          %485 = sbr.rel (%p483) target = $region64
        $region63: #{tpu_custom_call.1} parent=55 // pred_region
          %486 = dma.done %s479, 128
        $region64: #{tpu_custom_call.1} parent=55 // pred_fallthru
          _
        %s487 = sand.u32 %s37, 1
        %s488 = scalar_lea.sflag [#allocation6], %s487
        %s489 = sand.u32 %s115, 1
        %s490 = smul.addr %s489, 8
        %s491 = scalar_lea.vmem [#allocation7], %s490
        // Predicated region
        $region65: #{tpu_custom_call.1} parent=55 // pred_check
          %p492 = pneg %p128
        $region66: #{tpu_custom_call.1} parent=55 // pred_check_branch
          %494 = sbr.rel (%p492) target = $region68
        $region67: #{tpu_custom_call.1} parent=55 // pred_region
          %495 = dma.done %s488, 128
        $region68: #{tpu_custom_call.1} parent=55 // pred_fallthru
          _
        // Predicated region
        $region69: #{tpu_custom_call.1} parent=55 // pred_check
          %p496 = pneg %p149
        $region70: #{tpu_custom_call.1} parent=55 // pred_check_branch
          %498 = sbr.rel (%p496) target = $region72
        $region71: #{tpu_custom_call.1} parent=55 // pred_region
          %499 = dma.done [#allocation9], 512
        $region72: #{tpu_custom_call.1} parent=55 // pred_fallthru
          _
        // Predicated region
        $region73: #{tpu_custom_call.1} parent=55 // pred_check
          %p500 = pneg %p170
        $region74: #{tpu_custom_call.1} parent=55 // pred_check_branch
          %502 = sbr.rel (%p500) target = $region76
        $region75: #{tpu_custom_call.1} parent=55 // pred_region
          %503 = dma.done [#allocation9], 512
        $region76: #{tpu_custom_call.1} parent=55 // pred_fallthru
          _
        // Predicated region
        $region77: #{tpu_custom_call.1} parent=55 // pred_check
          %p504 = pneg %p191
        $region78: #{tpu_custom_call.1} parent=55 // pred_check_branch
          %506 = sbr.rel (%p504) target = $region80
        $region79: #{tpu_custom_call.1} parent=55 // pred_region
          %507 = dma.done [#allocation12], 512
        $region80: #{tpu_custom_call.1} parent=55 // pred_fallthru
          _
        %s508 = sand.u32 %s59, 1
        %s509 = scalar_lea.sflag [#allocation3], %s508
        %s510 = sand.u32 %s59, 1
        %s511 = smul.addr %s510, 8
        %s512 = scalar_lea.vmem [#allocation2], %s511
        %p513 = pneg %p72
        %p514 = pneg %p69
        %s515 = sand.u32 %s37, 1
        %s516 = scalar_lea.sflag [#allocation6], %s515
        %s517 = sand.u32 %s87, 1
        %s518 = smul.addr %s517, 8
        %s519 = scalar_lea.vmem [#allocation5], %s518
        %p520 = pneg %p100
        %p521 = pneg %p97
        %s522 = sand.u32 %s37, 1
        %s523 = scalar_lea.sflag [#allocation6], %s522
        %s524 = sand.u32 %s115, 1
        %s525 = smul.addr %s524, 8
        %s526 = scalar_lea.vmem [#allocation7], %s525
        %p527 = pneg %p128
        %p528 = pneg %p125
        %p529 = pneg %p149
        %p530 = pneg %p146
        %p531 = pneg %p170
        %p532 = pneg %p167
        %p533 = pneg %p191
        %p534 = pneg %p188
        %p535 = pneg %p212
        %p536 = pneg %p209
        %p537 = pneg %p233
        %p538 = pneg %p230
        %p539 = pneg %p254
        %p540 = pneg %p251
        %p541 = pneg %p282
        %p542 = pneg %p279
        %s543 = sand.u32 %s269, 1
        %s544 = scalar_lea.sflag [#allocation4], %s543
        %s545 = sand.u32 %s269, 1
        %s546 = smul.addr %s545, 8
        %s547 = scalar_lea.vmem [#allocation13], %s546
        %p548 = pneg %p310
        %p549 = pneg %p307
        %s550 = sand.u32 %s37, 1
        %s551 = scalar_lea.sflag [#allocation15], %s550
        %s552 = sand.u32 %s297, 1
        %s553 = smul.addr %s552, 8
        %s554 = scalar_lea.vmem [#allocation14], %s553
        %p555 = pneg %p338
        %p556 = pneg %p335
        %s557 = sand.u32 %s37, 1
        %s558 = scalar_lea.sflag [#allocation15], %s557
        %s559 = sand.u32 %s325, 1
        %s560 = smul.addr %s559, 8
        %s561 = scalar_lea.vmem [#allocation16], %s560
        %v562 = vld [vmem:[%s473] sm:$0xff]
        %v563 = vld [vmem:[%s482] sm:$0xff]
        %v564 = vld [vmem:[%s491] sm:$0xff]
        %v565 = vld [vmem:[#allocation8] sm:$0xff]
        %v566 = vld [vmem:[#allocation8 + $0x8] sm:$0xff]
        %v567 = vld [vmem:[#allocation8 + $0x10] sm:$0xff]
        %v568 = vld [vmem:[#allocation8 + $0x18] sm:$0xff]
        %v569 = vld [vmem:[%s6] sm:$0x1]
        %v571 = vlaneseq
        %v572 = vshrl.u32 %v571, 7
        %v573 = vsub.s32 0, %v572
        %v574 = vrot.slane %v569, %v573
        %vm576 = vcmask 261120
        %v578 = vsel %vm576, %v562, 0
        %580 = vmatprep.subr.mxu0 0.0
        %581 = vmatpush1.msra.mxu0 %v565
        %582 = vmatprep.subr.mxu0 0.0
        %583 = vmatpush1.msra.mxu0 %v566
        %584 = vmatprep.subr.mxu0 0.0
        %585 = vmatpush1.msra.mxu0 %v567
        %586 = vmatprep.subr.mxu0 0.0
        %587 = vmatpush1.msra.mxu0 %v568
        %588 = vmatprep.subr.mxu0 0.0
        %589 = vmatpush1.msra.mxu0 0.0
        %590 = vmatprep.subr.mxu0 0.0
        %591 = vmatpush1.msra.mxu0 0.0
        %592 = vmatprep.subr.mxu0 0.0
        %593 = vmatpush1.msra.mxu0 0.0
        %594 = vmatprep.subr.mxu0 0.0
        %595 = vmatpush1.msra.mxu0 0.0
        %596 = vmatprep.subr.mxu0 0.0
        %597 = vmatpush1.msra.mxu0 0.0
        %598 = vmatprep.subr.mxu0 0.0
        %599 = vmatpush1.msra.mxu0 0.0
        %600 = vmatprep.subr.mxu0 0.0
        %601 = vmatpush1.msra.mxu0 0.0
        %602 = vmatprep.subr.mxu0 0.0
        %603 = vmatpush1.msra.mxu0 0.0
        %604 = vmatprep.subr.mxu0 0.0
        %605 = vmatpush1.msra.mxu0 0.0
        %606 = vmatprep.subr.mxu0 0.0
        %607 = vmatpush1.msra.mxu0 0.0
        %608 = vmatprep.subr.mxu0 0.0
        %609 = vmatpush1.msra.mxu0 0.0
        %610 = vmatprep.subr.mxu0 0.0
        %611 = vmatpush1.msra.mxu0 0.0
        %612 = vmatprep.subr.mxu0 0.0
        %613 = vmatpush1.msra.mxu0 0.0
        %614 = vmatprep.subr.mxu0 0.0
        %615 = vmatpush1.msra.mxu0 0.0
        %616 = vmatprep.subr.mxu0 0.0
        %617 = vmatpush1.msra.mxu0 0.0
        %618 = vmatprep.subr.mxu0 0.0
        %619 = vmatpush1.msra.mxu0 0.0
        %620 = vmatprep.subr.mxu0 0.0
        %621 = vmatpush1.msra.mxu0 0.0
        %622 = vmatprep.subr.mxu0 0.0
        %623 = vmatpush1.msra.mxu0 0.0
        %624 = vmatprep.subr.mxu0 0.0
        %625 = vmatpush1.msra.mxu0 0.0
        %626 = vmatprep.subr.mxu0 0.0
        %627 = vmatpush1.msra.mxu0 0.0
        %628 = vmatprep.subr.mxu0 0.0
        %629 = vmatpush1.msra.mxu0 0.0
        %630 = vmatprep.subr.mxu0 0.0
        %631 = vmatpush1.msra.mxu0 0.0
        %632 = vmatprep.subr.mxu0 0.0
        %633 = vmatpush1.msra.mxu0 0.0
        %634 = vmatprep.subr.mxu0 0.0
        %635 = vmatpush1.msra.mxu0 0.0
        %636 = vmatprep.subr.mxu0 0.0
        %637 = vmatpush1.msra.mxu0 0.0
        %638 = vmatprep.subr.mxu0 0.0
        %639 = vmatpush1.msra.mxu0 0.0
        %640 = vmatprep.subr.mxu0 0.0
        %641 = vmatpush1.msra.mxu0 0.0
        %642 = vmatprep.subr.mxu0 0.0
        %643 = vmatpush1.msra.mxu0 0.0
        %644 = vmatprep.mubr.f32.mxu0 0.0
        %645 = vmatmul.mubr.f32.gmra.mrb[0].mxu0 %v578
        %v646 = vpop.f32.mrb[0].mxu0
        %v647 = vadd.f32 %v574, %v646
        %v648 = vpop.f32.mrb[0].mxu0
        %649 = vdwg.mxu0
        %v650 = vld [vmem:[#allocation10] sm:$0xff]
        %v651 = vld [vmem:[#allocation10 + $0x8] sm:$0xff]
        %v652 = vld [vmem:[#allocation10 + $0x10] sm:$0xff]
        %v653 = vld [vmem:[#allocation10 + $0x18] sm:$0xff]
        %v654 = vld [vmem:[%s7] sm:$0x1]
        %v656 = vlaneseq
        %v657 = vshrl.u32 %v656, 7
        %v658 = vsub.s32 0, %v657
        %v659 = vrot.slane %v654, %v658
        %v662 = vsel %vm576, %v563, 0
        %664 = vmatprep.subr.mxu0 0.0
        %665 = vmatpush1.msra.mxu0 %v650
        %666 = vmatprep.subr.mxu0 0.0
        %667 = vmatpush1.msra.mxu0 %v651
        %668 = vmatprep.subr.mxu0 0.0
        %669 = vmatpush1.msra.mxu0 %v652
        %670 = vmatprep.subr.mxu0 0.0
        %671 = vmatpush1.msra.mxu0 %v653
        %672 = vmatprep.subr.mxu0 0.0
        %673 = vmatpush1.msra.mxu0 0.0
        %674 = vmatprep.subr.mxu0 0.0
        %675 = vmatpush1.msra.mxu0 0.0
        %676 = vmatprep.subr.mxu0 0.0
        %677 = vmatpush1.msra.mxu0 0.0
        %678 = vmatprep.subr.mxu0 0.0
        %679 = vmatpush1.msra.mxu0 0.0
        %680 = vmatprep.subr.mxu0 0.0
        %681 = vmatpush1.msra.mxu0 0.0
        %682 = vmatprep.subr.mxu0 0.0
        %683 = vmatpush1.msra.mxu0 0.0
        %684 = vmatprep.subr.mxu0 0.0
        %685 = vmatpush1.msra.mxu0 0.0
        %686 = vmatprep.subr.mxu0 0.0
        %687 = vmatpush1.msra.mxu0 0.0
        %688 = vmatprep.subr.mxu0 0.0
        %689 = vmatpush1.msra.mxu0 0.0
        %690 = vmatprep.subr.mxu0 0.0
        %691 = vmatpush1.msra.mxu0 0.0
        %692 = vmatprep.subr.mxu0 0.0
        %693 = vmatpush1.msra.mxu0 0.0
        %694 = vmatprep.subr.mxu0 0.0
        %695 = vmatpush1.msra.mxu0 0.0
        %696 = vmatprep.subr.mxu0 0.0
        %697 = vmatpush1.msra.mxu0 0.0
        %698 = vmatprep.subr.mxu0 0.0
        %699 = vmatpush1.msra.mxu0 0.0
        %700 = vmatprep.subr.mxu0 0.0
        %701 = vmatpush1.msra.mxu0 0.0
        %702 = vmatprep.subr.mxu0 0.0
        %703 = vmatpush1.msra.mxu0 0.0
        %704 = vmatprep.subr.mxu0 0.0
        %705 = vmatpush1.msra.mxu0 0.0
        %706 = vmatprep.subr.mxu0 0.0
        %707 = vmatpush1.msra.mxu0 0.0
        %708 = vmatprep.subr.mxu0 0.0
        %709 = vmatpush1.msra.mxu0 0.0
        %710 = vmatprep.subr.mxu0 0.0
        %711 = vmatpush1.msra.mxu0 0.0
        %712 = vmatprep.subr.mxu0 0.0
        %713 = vmatpush1.msra.mxu0 0.0
        %714 = vmatprep.subr.mxu0 0.0
        %715 = vmatpush1.msra.mxu0 0.0
        %716 = vmatprep.subr.mxu0 0.0
        %717 = vmatpush1.msra.mxu0 0.0
        %718 = vmatprep.subr.mxu0 0.0
        %719 = vmatpush1.msra.mxu0 0.0
        %720 = vmatprep.subr.mxu0 0.0
        %721 = vmatpush1.msra.mxu0 0.0
        %722 = vmatprep.subr.mxu0 0.0
        %723 = vmatpush1.msra.mxu0 0.0
        %724 = vmatprep.subr.mxu0 0.0
        %725 = vmatpush1.msra.mxu0 0.0
        %726 = vmatprep.subr.mxu0 0.0
        %727 = vmatpush1.msra.mxu0 0.0
        %728 = vmatprep.mubr.f32.mxu0 0.0
        %729 = vmatmul.mubr.f32.gmra.mrb[0].mxu0 %v662
        %v730 = vpop.f32.mrb[0].mxu0
        %v731 = vadd.f32 %v659, %v730
        %v732 = vpop.f32.mrb[0].mxu0
        %733 = vdwg.mxu0
        %v734 = vld [vmem:[#allocation11] sm:$0xff]
        %v735 = vld [vmem:[#allocation11 + $0x8] sm:$0xff]
        %v736 = vld [vmem:[#allocation11 + $0x10] sm:$0xff]
        %v737 = vld [vmem:[#allocation11 + $0x18] sm:$0xff]
        %v738 = vld [vmem:[%s8] sm:$0x1]
        %v740 = vlaneseq
        %v741 = vshrl.u32 %v740, 7
        %v742 = vsub.s32 0, %v741
        %v743 = vrot.slane %v738, %v742
        %v746 = vsel %vm576, %v564, 0
        %748 = vmatprep.subr.mxu0 0.0
        %749 = vmatpush1.msra.mxu0 %v734
        %750 = vmatprep.subr.mxu0 0.0
        %751 = vmatpush1.msra.mxu0 %v735
        %752 = vmatprep.subr.mxu0 0.0
        %753 = vmatpush1.msra.mxu0 %v736
        %754 = vmatprep.subr.mxu0 0.0
        %755 = vmatpush1.msra.mxu0 %v737
        %756 = vmatprep.subr.mxu0 0.0
        %757 = vmatpush1.msra.mxu0 0.0
        %758 = vmatprep.subr.mxu0 0.0
        %759 = vmatpush1.msra.mxu0 0.0
        %760 = vmatprep.subr.mxu0 0.0
        %761 = vmatpush1.msra.mxu0 0.0
        %762 = vmatprep.subr.mxu0 0.0
        %763 = vmatpush1.msra.mxu0 0.0
        %764 = vmatprep.subr.mxu0 0.0
        %765 = vmatpush1.msra.mxu0 0.0
        %766 = vmatprep.subr.mxu0 0.0
        %767 = vmatpush1.msra.mxu0 0.0
        %768 = vmatprep.subr.mxu0 0.0
        %769 = vmatpush1.msra.mxu0 0.0
        %770 = vmatprep.subr.mxu0 0.0
        %771 = vmatpush1.msra.mxu0 0.0
        %772 = vmatprep.subr.mxu0 0.0
        %773 = vmatpush1.msra.mxu0 0.0
        %774 = vmatprep.subr.mxu0 0.0
        %775 = vmatpush1.msra.mxu0 0.0
        %776 = vmatprep.subr.mxu0 0.0
        %777 = vmatpush1.msra.mxu0 0.0
        %778 = vmatprep.subr.mxu0 0.0
        %779 = vmatpush1.msra.mxu0 0.0
        %780 = vmatprep.subr.mxu0 0.0
        %781 = vmatpush1.msra.mxu0 0.0
        %782 = vmatprep.subr.mxu0 0.0
        %783 = vmatpush1.msra.mxu0 0.0
        %784 = vmatprep.subr.mxu0 0.0
        %785 = vmatpush1.msra.mxu0 0.0
        %786 = vmatprep.subr.mxu0 0.0
        %787 = vmatpush1.msra.mxu0 0.0
        %788 = vmatprep.subr.mxu0 0.0
        %789 = vmatpush1.msra.mxu0 0.0
        %790 = vmatprep.subr.mxu0 0.0
        %791 = vmatpush1.msra.mxu0 0.0
        %792 = vmatprep.subr.mxu0 0.0
        %793 = vmatpush1.msra.mxu0 0.0
        %794 = vmatprep.subr.mxu0 0.0
        %795 = vmatpush1.msra.mxu0 0.0
        %796 = vmatprep.subr.mxu0 0.0
        %797 = vmatpush1.msra.mxu0 0.0
        %798 = vmatprep.subr.mxu0 0.0
        %799 = vmatpush1.msra.mxu0 0.0
        %800 = vmatprep.subr.mxu0 0.0
        %801 = vmatpush1.msra.mxu0 0.0
        %802 = vmatprep.subr.mxu0 0.0
        %803 = vmatpush1.msra.mxu0 0.0
        %804 = vmatprep.subr.mxu0 0.0
        %805 = vmatpush1.msra.mxu0 0.0
        %806 = vmatprep.subr.mxu0 0.0
        %807 = vmatpush1.msra.mxu0 0.0
        %808 = vmatprep.subr.mxu0 0.0
        %809 = vmatpush1.msra.mxu0 0.0
        %810 = vmatprep.subr.mxu0 0.0
        %811 = vmatpush1.msra.mxu0 0.0
        %812 = vmatprep.mubr.f32.mxu0 0.0
        %813 = vmatmul.mubr.f32.gmra.mrb[0].mxu0 %v746
        %v814 = vpop.f32.mrb[0].mxu0
        %v815 = vadd.f32 %v743, %v814
        %v816 = vpop.f32.mrb[0].mxu0
        %817 = vdwg.mxu0
        %v818 = vmul.f32 %v647, 0.35355338
        %819 = vst.msk [vmem:[%s547] sm:$0xff] %vm576, %v818
        %820 = vst.msk [vmem:[%s554] sm:$0xff] %vm576, %v731
        %821 = vst.msk [vmem:[%s561] sm:$0xff] %vm576, %v815
        %s822 = sand.u32 %s269, 1
        %s823 = scalar_lea.sflag [#allocation4], %s822
        %s824 = sand.u32 %s269, 1
        %s825 = smul.addr %s824, 8
        %s826 = scalar_lea.vmem [#allocation13], %s825
        %s827 = sand.u32 %s37, 1
        %s828 = scalar_lea.sflag [#allocation15], %s827
        %s829 = sand.u32 %s297, 1
        %s830 = smul.addr %s829, 8
        %s831 = scalar_lea.vmem [#allocation14], %s830
        %s832 = sand.u32 %s37, 1
        %s833 = scalar_lea.sflag [#allocation15], %s832
        %s834 = sand.u32 %s325, 1
        %s835 = smul.addr %s834, 8
        %s836 = scalar_lea.vmem [#allocation16], %s835
        // Predicated region
        $region81: #{tpu_custom_call.1} parent=55 // pred_check
          %p837 = pneg %p279
        $region82: #{tpu_custom_call.1} parent=55 // pred_check_branch
          %839 = sbr.rel (%p837) target = $region84
        $region83: #{tpu_custom_call.1} parent=55 // pred_region
          %s841 = ssub.s32 128, 128
          %842 = vsyncadd %s823, %s841
          %s843 = sadd.s32 %s42, %s41
          %s844 = smul.addr %s843, 128
          %s845 = scalar_lea.hbm %s9, %s844
          %s847 = sshll.u32 %s826, 4
          %s848 = int_to_ptr.vmem [resolvable:$true] %s847
          %850 = dma.vmem_to_hbm [thread:$0]  %s848, 128, %s845, %s823
        $region84: #{tpu_custom_call.1} parent=55 // pred_fallthru
          _
        // Predicated region
        $region85: #{tpu_custom_call.1} parent=55 // pred_check
          %p851 = pneg %p307
        $region86: #{tpu_custom_call.1} parent=55 // pred_check_branch
          %853 = sbr.rel (%p851) target = $region88
        $region87: #{tpu_custom_call.1} parent=55 // pred_region
          %s855 = ssub.s32 128, 128
          %856 = vsyncadd %s828, %s855
          %s857 = sadd.s32 %s42, %s41
          %s858 = smul.addr %s857, 128
          %s859 = scalar_lea.hbm %s10, %s858
          %s861 = sshll.u32 %s831, 4
          %s862 = int_to_ptr.vmem [resolvable:$true] %s861
          %864 = dma.vmem_to_hbm [thread:$0]  %s862, 128, %s859, %s828
        $region88: #{tpu_custom_call.1} parent=55 // pred_fallthru
          _
        // Predicated region
        $region89: #{tpu_custom_call.1} parent=55 // pred_check
          %p865 = pneg %p335
        $region90: #{tpu_custom_call.1} parent=55 // pred_check_branch
          %867 = sbr.rel (%p865) target = $region92
        $region91: #{tpu_custom_call.1} parent=55 // pred_region
          %s869 = ssub.s32 128, 128
          %870 = vsyncadd %s833, %s869
          %s871 = sadd.s32 %s42, %s41
          %s872 = smul.addr %s871, 128
          %s873 = scalar_lea.hbm %s11, %s872
          %s875 = sshll.u32 %s836, 4
          %s876 = int_to_ptr.vmem [resolvable:$true] %s875
          %878 = dma.vmem_to_hbm [thread:$0]  %s876, 128, %s873, %s833
        $region92: #{tpu_custom_call.1} parent=55 // pred_fallthru
          _
      $region56: #{tpu_custom_call.1} parent=5 // pred_fallthru
        _
      %p879 = scmp.le.s32.totalorder 2, %s32
      // Predicated region
      $region93: #{tpu_custom_call.1} parent=5 // pred_check
        %p880 = pneg %p879
      $region94: #{tpu_custom_call.1} parent=5 // pred_check_branch
        %882 = sbr.rel (%p880) target = $region96
      $region95: #{tpu_custom_call.1} parent=5 // pred_region
        %s883 = ssub.s32 %s32, 2
        // Predicated region
        $region97: #{tpu_custom_call.1} parent=95 // pred_check
          %p884 = pneg %p285
        $region98: #{tpu_custom_call.1} parent=95 // pred_check_branch
          %886 = sbr.rel (%p884) target = $region100
        $region99: #{tpu_custom_call.1} parent=95 // pred_region
          %s887 = sand.u32 %s270, 1
          %s888 = scalar_lea.sflag [#allocation4], %s887
          %s889 = sand.u32 %s270, 1
          %s890 = smul.addr %s889, 8
          %s891 = scalar_lea.vmem [#allocation13], %s890
          %892 = dma.done %s888, 128
        $region100: #{tpu_custom_call.1} parent=95 // pred_fallthru
          _
        // Predicated region
        $region101: #{tpu_custom_call.1} parent=95 // pred_check
          %p893 = pneg %p313
        $region102: #{tpu_custom_call.1} parent=95 // pred_check_branch
          %895 = sbr.rel (%p893) target = $region104
        $region103: #{tpu_custom_call.1} parent=95 // pred_region
          %s896 = sand.u32 %s38, 1
          %s897 = scalar_lea.sflag [#allocation15], %s896
          %s898 = sand.u32 %s298, 1
          %s899 = smul.addr %s898, 8
          %s900 = scalar_lea.vmem [#allocation14], %s899
          %901 = dma.done %s897, 128
        $region104: #{tpu_custom_call.1} parent=95 // pred_fallthru
          _
        // Predicated region
        $region105: #{tpu_custom_call.1} parent=95 // pred_check
          %p902 = pneg %p341
        $region106: #{tpu_custom_call.1} parent=95 // pred_check_branch
          %904 = sbr.rel (%p902) target = $region108
        $region107: #{tpu_custom_call.1} parent=95 // pred_region
          %s905 = sand.u32 %s38, 1
          %s906 = scalar_lea.sflag [#allocation15], %s905
          %s907 = sand.u32 %s326, 1
          %s908 = smul.addr %s907, 8
          %s909 = scalar_lea.vmem [#allocation16], %s908
          %910 = dma.done %s906, 128
        $region108: #{tpu_custom_call.1} parent=95 // pred_fallthru
          _
      $region96: #{tpu_custom_call.1} parent=5 // pred_fallthru
        _
    $region6: #{tpu_custom_call.1} parent=1 // loop_footer
      %s36 = sadd.s32 1, %s32
    $region7: #{tpu_custom_call.1} parent=1 // loop_footer_branch
      %31 = sbr.rel target = $region3
    $region8: #{tpu_custom_call.1} parent=1 // loop_exit
      _
    %911 = vsyncpa [#allocation3], 1
    %s912 = scalar_lea.sflag [#allocation3], 1
    %913 = vsyncpa %s912, 1
    %914 = vsyncpa [#allocation6], 1
    %s915 = scalar_lea.sflag [#allocation6], 1
    %916 = vsyncpa %s915, 1
    %917 = vsyncpa [#allocation9], 1
    %918 = vsyncpa [#allocation12], 1
    %919 = vsyncpa [#allocation4], 1
    %s920 = scalar_lea.sflag [#allocation4], 1
    %921 = vsyncpa %s920, 1
    %922 = vsyncpa [#allocation15], 1
    %s923 = scalar_lea.sflag [#allocation15], 1
    %924 = vsyncpa %s923, 1

</llo_original>
